<compile_context>
chip_gen: v6e
topology: v6e:2x2x1
jax: 0.10.0
libtpu: 0.0.40
codegen_flags: <defaults>
</compile_context>

<pallas_src>
import functools
import numpy as np
import jax
import jax.numpy as jnp
from jax.experimental import pallas as pl
from jax.experimental.pallas import tpu as pltpu

EPS = 1e-6
_SLOPE = 0.01                       # PyTorch LeakyReLU / VNLeakyReLU default
_VMEM_LIMIT_BYTES = 48 * 1024 * 1024  # fits v7x 64 MiB/TC with headroom; well
                                       # under v5e/v6e 128 MiB physical VMEM.


# ----------------------------------------------------------------------------
# In-kernel building blocks (lane-packed [T, 3*C] vector layout)
# ----------------------------------------------------------------------------
def _leaky_relu(x, slope=_SLOPE):
    return jnp.where(x >= 0, x, slope * x)


def _gv_linear_packed(x_s, v_p, Wc3_t, W23_t, Wg_t, bg, Ws_n_t, Ws_x_t):
    """ComplexGVLinear on one row tile, vectors lane-packed.

    x_s   : [T, in_scalar]
    v_p   : [T, 3*in_vector]                 (x|y|z along lanes)
    Wc3_t : [3*in_vector, 3*H]               block_diag((FC_R + FC_I).T)
    W23_t : [3*H, 3*out_vector]              block_diag(lin_vector2.T)
    Wg_t  : [out_scalar, out_vector], bg : [1, out_vector]
    Ws_n_t: [H, out_scalar], Ws_x_t: [in_scalar, out_scalar]   (split lin_scalar)
    """
    f32 = jnp.float32
    H = Wc3_t.shape[1] // 3
    # TODO(synk): reference apply_complex mixes a rank-2 scalar with the rank-3
    # vector (shape-inconsistent even in PyTorch); we apply (FC_R + FC_I) as one
    # channel map to the vector part — the shape-consistent GVLinear reading.
    vh = jnp.dot(v_p, Wc3_t, preferred_element_type=f32)            # [T, 3H]
    vx, vy, vz = vh[:, :H], vh[:, H:2 * H], vh[:, 2 * H:]
    # NOTE: no eps under the sqrt (matches torch.norm); forward-only safe.
    norm = jnp.sqrt(vx * vx + vy * vy + vz * vz)                    # [T, H]
    # TODO(synk): reference torch.cat([norm, features_real]) is rank-inconsistent;
    # lin_scalar is applied to [norm | input-scalars], split into two matmuls.
    out_s = (jnp.dot(norm, Ws_n_t, preferred_element_type=f32) +
             jnp.dot(x_s, Ws_x_t, preferred_element_type=f32))      # [T, out_s]
    out_v = jnp.dot(vh, W23_t, preferred_element_type=f32)          # [T, 3*out_v]

    # gating = softmax(scalar_to_vector_gates(out_real) * out_s.size(-1)**-0.5)
    scale = out_s.shape[-1] ** -0.5
    logits = (jnp.dot(out_s, Wg_t, preferred_element_type=f32) + bg) * scale
    logits = logits - jnp.max(logits, axis=-1, keepdims=True)
    e = jnp.exp(logits)
    gate = e * pl.reciprocal(jnp.sum(e, axis=-1, keepdims=True), approx=True)
    gate3 = jnp.concatenate([gate, gate, gate], axis=-1)            # [T, 3*out_v]
    return out_s, gate3 * out_v


def _vn_leaky_relu_packed(v_p, Wd3_t, slope=_SLOPE):
    """VNLeakyReLU on a lane-packed [T, 3*C] vector tile.  Wd3_t: [3C, 3C]."""
    f32 = jnp.float32
    C = Wd3_t.shape[1] // 3
    d = jnp.dot(v_p, Wd3_t, preferred_element_type=f32)             # [T, 3C]
    vx, vy, vz = v_p[:, :C], v_p[:, C:2 * C], v_p[:, 2 * C:]
    dx, dy, dz = d[:, :C], d[:, C:2 * C], d[:, 2 * C:]
    dotp = vx * dx + vy * dy + vz * dz                              # [T, C]
    dsq = dx * dx + dy * dy + dz * dz
    coef = jnp.where(dotp >= 0, jnp.zeros_like(dotp), dotp / (dsq + EPS))
    coef3 = jnp.concatenate([coef, coef, coef], axis=-1)            # [T, 3C]
    return slope * v_p + (1.0 - slope) * (v_p - coef3 * d)


# ----------------------------------------------------------------------------
# Kernel 1: node_gvlinear per node (tiny, amortized over edges)
# ----------------------------------------------------------------------------
def _node_kernel(slab_ref, Wc3, W23, Wg, bg, Wsn, Wsx, o_ref, *, node_sca):
    slab = slab_ref[...].astype(jnp.float32)
    x_s = slab[:, :node_sca]
    v_p = slab[:, node_sca:]
    out_s, out_v = _gv_linear_packed(x_s, v_p, Wc3[...], W23[...], Wg[...],
                                     bg[...], Wsn[...], Wsx[...])
    o_ref[...] = jnp.concatenate([out_s, out_v], axis=-1)


# ----------------------------------------------------------------------------
# Kernel 2: fused per-edge message (single lane-dense bf16 input slab)
# ----------------------------------------------------------------------------
def _edge_kernel(slab_ref,
                 eWc3, eW23, eWg, ebg, eWsn, eWsx, eWd3,
                 Wsl, bsl, We2n3, be2n3, Wn2e3, bn2e3, Wev3, bev3,
                 oWc3, oW23, oWg, obg, oWsn, oWsx,
                 o_ref, *, out_sca, out_vec, edge_sca, edge_vec):
    f32 = jnp.float32
    slab = slab_ref[...].astype(f32)   # upcast once; all math in f32 (v5e-safe)

    node_w = out_sca + 3 * out_vec
    node_real = slab[:, :out_sca]                                   # [T, out_s]
    node_imag = slab[:, out_sca:node_w]                             # [T, 3*out_v]
    o1 = node_w
    edge_s = slab[:, o1:o1 + edge_sca]                              # [T, edge_s]
    edge_v = slab[:, o1 + edge_sca:o1 + edge_sca + 3 * edge_vec]    # [T, 3*edge_v]
    row_scale = slab[:, -1:]                                        # [T, 1]

    # ---- edge_gvp = ComplexGVLinear + activations ----
    gv_s, gv_v = _gv_linear_packed(edge_s, edge_v, eWc3[...], eW23[...],
                                   eWg[...], ebg[...], eWsn[...], eWsx[...])
    # TODO(synk): reference applies act_vec to the scalar and act_sca to the
    # vector (shape-impossible); LeakyReLU on scalars, VNLeakyReLU on vectors.
    edge_real = _leaky_relu(gv_s)                                   # [T, hid_s]
    edge_imag = _vn_leaky_relu_packed(gv_v, eWd3[...])              # [T, 3*hid_v]

    # ---- mixing ----
    y_real = node_real * (jnp.dot(edge_real, Wsl[...],
                                  preferred_element_type=f32) + bsl[...])
    e2n3 = jnp.dot(edge_real, We2n3[...], preferred_element_type=f32) + be2n3[...]
    n2e3 = jnp.dot(node_real, Wn2e3[...], preferred_element_type=f32) + bn2e3[...]
    evl = jnp.dot(edge_imag, Wev3[...], preferred_element_type=f32) + bev3[...]
    y_imag = e2n3 * node_imag + n2e3 * evl                          # [T, 3*out_v]

    # ---- out_gvlienar ----
    out_s, out_v = _gv_linear_packed(y_real, y_imag, oWc3[...], oW23[...],
                                     oWg[...], obg[...], oWsn[...], oWsx[...])

    # one lane-packed store; annealing cutoff fused in.
    o_ref[...] = jnp.concatenate([out_s, out_v], axis=-1) * row_scale


# ----------------------------------------------------------------------------
# Parameters (deterministic, PyTorch-default-style init; keeps every declared
# parameter tensor and its shape)
# ----------------------------------------------------------------------------
def _init_linear(key, out_dim, in_dim, bias):
    kw, kb = jax.random.split(key)
    bound = 1.0 / (in_dim ** 0.5)
    W = jax.random.uniform(kw, (out_dim, in_dim), jnp.float32, -bound, bound)
    if not bias:
        return W
    b = jax.random.uniform(kb, (1, out_dim), jnp.float32, -bound, bound)
    return W, b


def init_params(key, node_sca, node_vec, edge_sca, edge_vec, out_sca, out_vec):
    hid_sca, hid_vec = edge_sca, edge_vec
    keys = iter(jax.random.split(key, 32))
    p = {}
    # node_gvlinear = ComplexGVLinear(node_sca, node_vec, out_sca, out_vec)
    H = max(node_vec, out_vec)
    p['nWr'] = _init_linear(next(keys), H, node_vec, False)
    p['nWi'] = _init_linear(next(keys), H, node_vec, False)
    p['nW2'] = _init_linear(next(keys), out_vec, H, False)
    p['nWg'], p['nbg'] = _init_linear(next(keys), out_vec, out_sca, True)
    p['nWs'] = _init_linear(next(keys), out_sca, node_sca + H, False)
    # edge_gvp.gv_linear = ComplexGVLinear(edge_sca, edge_vec, hid_sca, hid_vec)
    H2 = max(edge_vec, hid_vec)
    p['eWr'] = _init_linear(next(keys), H2, edge_vec, False)
    p['eWi'] = _init_linear(next(keys), H2, edge_vec, False)
    p['eW2'] = _init_linear(next(keys), hid_vec, H2, False)
    p['eWg'], p['ebg'] = _init_linear(next(keys), hid_vec, hid_sca, True)
    p['eWs'] = _init_linear(next(keys), hid_sca, edge_sca + H2, False)
    p['eWd'] = _init_linear(next(keys), hid_vec, hid_vec, False)   # VNLeakyReLU.map_to_dir
    # mixing linears
    p['Wsl'], p['bsl'] = _init_linear(next(keys), out_sca, hid_sca, True)     # sca_linear
    p['We2n'], p['be2n'] = _init_linear(next(keys), out_vec, hid_sca, True)   # e2n_linear
    p['Wn2e'], p['bn2e'] = _init_linear(next(keys), out_vec, out_sca, True)   # n2e_linear
    p['Wev'], p['bev'] = _init_linear(next(keys), out_vec, hid_vec, True)     # edge_vnlinear
    # out_gvlienar = ComplexGVLinear(out_sca, out_vec, out_sca, out_vec)
    H3 = max(out_vec, out_vec)
    p['oWr'] = _init_linear(next(keys), H3, out_vec, False)
    p['oWi'] = _init_linear(next(keys), H3, out_vec, False)
    p['oW2'] = _init_linear(next(keys), out_vec, H3, False)
    p['oWg'], p['obg'] = _init_linear(next(keys), out_vec, out_sca, True)
    p['oWs'] = _init_linear(next(keys), out_sca, out_sca + H3, False)
    return p


# ----------------------------------------------------------------------------
# Wrapper
# ----------------------------------------------------------------------------
def _round_up(x, m):
    return ((x + m - 1) // m) * m


def _block_diag3(Wt):
    """[in, out] -> block_diag(Wt, Wt, Wt) : [3*in, 3*out] (built once outside)."""
    i, o = Wt.shape
    Z = jnp.zeros((i, o), Wt.dtype)
    return jnp.concatenate([
        jnp.concatenate([Wt, Z, Z], axis=1),
        jnp.concatenate([Z, Wt, Z], axis=1),
        jnp.concatenate([Z, Z, Wt], axis=1)], axis=0)


def _rep3_cols(Wt):
    """[in, out] -> [in, 3*out]  (same weight applied to each xyz component)."""
    return jnp.concatenate([Wt, Wt, Wt], axis=1)


def complex_message_forward(p, node_s, node_v, edge_s, edge_v, edge_index,
                            dist_ij=None, annealing=False, cutoff=10.0,
                            tile_edges=1024, tile_nodes=1024,
                            slab_dtype=jnp.bfloat16):
    f32 = jnp.float32
    N, node_sca = node_s.shape
    node_vec = node_v.shape[-1]
    E, edge_sca = edge_s.shape
    edge_vec = edge_v.shape[-1]
    out_sca = p['nWs'].shape[0]
    out_vec = p['nW2'].shape[0]
    H = p['nW2'].shape[1]
    H2 = p['eW2'].shape[1]
    H3 = p['oW2'].shape[1]

    # ---- weight prep (once, outside the kernels): fold FC_R+FC_I, transpose,
    #      split lin_scalar, block-diagonalize for the lane-packed xyz layout,
    #      replicate e2n/n2e columns so their outputs are already [T, 3*out_v].
    nWc3 = _block_diag3((p['nWr'] + p['nWi']).T)
    nW23 = _block_diag3(p['nW2'].T)
    nWsn, nWsx = p['nWs'][:, :H].T, p['nWs'][:, H:].T

    eWc3 = _block_diag3((p['eWr'] + p['eWi']).T)
    eW23 = _block_diag3(p['eW2'].T)
    eWsn, eWsx = p['eWs'][:, :H2].T, p['eWs'][:, H2:].T
    eWd3 = _block_diag3(p['eWd'].T)

    Wsl_t = p['Wsl'].T
    We2n3, be2n3 = _rep3_cols(p['We2n'].T), _rep3_cols(p['be2n'])
    Wn2e3, bn2e3 = _rep3_cols(p['Wn2e'].T), _rep3_cols(p['bn2e'])
    Wev3, bev3 = _block_diag3(p['Wev'].T), _rep3_cols(p['bev'])

    oWc3 = _block_diag3((p['oWr'] + p['oWi']).T)
    oW23 = _block_diag3(p['oW2'].T)
    oWsn, oWsx = p['oWs'][:, :H3].T, p['oWs'][:, H3:].T

    node_out_w = out_sca + 3 * out_vec

    # ---- Stage 1: node_gvlinear per node (small pallas_call, f32 I/O) ----
    node_vp = jnp.transpose(node_v, (1, 0, 2)).reshape(N, 3 * node_vec)
    node_slab = jnp.concatenate([node_s.astype(f32), node_vp.astype(f32)],
                                axis=-1)                            # [N, 40]
    node_in_w = node_sca + 3 * node_vec
    n_tile = _round_up(min(int(tile_nodes), _round_up(N, 8)), 8)
    N_pad = _round_up(N, n_tile)
    if N_pad > N:
        node_slab = jnp.pad(node_slab, ((0, N_pad - N), (0, 0)))

    node_wts = (nWc3, nW23, p['nWg'].T, p['nbg'], nWsn, nWsx)
    node_out = pl.pallas_call(
        functools.partial(_node_kernel, node_sca=node_sca),
        out_shape=jax.ShapeDtypeStruct((N_pad, node_out_w), f32),
        grid=(N_pad // n_tile,),
        in_specs=[pl.BlockSpec((n_tile, node_in_w), lambda i: (i, 0))]
                 + [pl.BlockSpec(w.shape, lambda i: (0, 0)) for w in node_wts],
        out_specs=pl.BlockSpec((n_tile, node_out_w), lambda i: (i, 0)),
        compiler_params=pltpu.CompilerParams(
            dimension_semantics=("parallel",),
            vmem_limit_bytes=_VMEM_LIMIT_BYTES),
    )(node_slab, *node_wts)

    # ---- gather per edge and pack ONE lane-dense slab (bf16 in HBM) ----
    # TODO(synk): a fully in-kernel dynamic row gather would also remove this
    # XLA gather; data-dependent gather is kept outside for robustness.
    node_g = node_out[:N][edge_index]                               # [E, 40]
    edge_vp = jnp.transpose(edge_v, (1, 0, 2)).reshape(E, 3 * edge_vec)
    if annealing:
        C = 0.5 * (jnp.cos(dist_ij * jnp.pi / cutoff) + 1.0)
        C = C * (dist_ij <= cutoff).astype(f32) * (dist_ij >= 0.0).astype(f32)
        row_scale = C.reshape(E, 1).astype(f32)
    else:
        row_scale = jnp.ones((E, 1), f32)
    edge_slab = jnp.concatenate(
        [node_g, edge_s.astype(f32), edge_vp.astype(f32), row_scale],
        axis=-1).astype(slab_dtype)                                 # [E, 81]
    in_w = node_out_w + edge_sca + 3 * edge_vec + 1

    sub = 16 if slab_dtype == jnp.bfloat16 else 8   # bf16 packs 2 rows/sublane
    tile = _round_up(min(int(tile_edges), _round_up(E, sub)), sub)
    E_pad = _round_up(E, tile)
    if E_pad > E:
        edge_slab = jnp.pad(edge_slab, ((0, E_pad - E), (0, 0)))

    edge_wts = (eWc3, eW23, p['eWg'].T, p['ebg'], eWsn, eWsx, eWd3,
                Wsl_t, p['bsl'], We2n3, be2n3, Wn2e3, bn2e3, Wev3, bev3,
                oWc3, oW23, p['oWg'].T, p['obg'], oWsn, oWsx)

    slab_out = pl.pallas_call(
        functools.partial(_edge_kernel, out_sca=out_sca, out_vec=out_vec,
                          edge_sca=edge_sca, edge_vec=edge_vec),
        out_shape=jax.ShapeDtypeStruct((E_pad, node_out_w), f32),
        grid=(E_pad // tile,),
        in_specs=[pl.BlockSpec((tile, in_w), lambda i: (i, 0))]
                 + [pl.BlockSpec(w.shape, lambda i: (0, 0)) for w in edge_wts],
        out_specs=pl.BlockSpec((tile, node_out_w), lambda i: (i, 0)),
        compiler_params=pltpu.CompilerParams(
            dimension_semantics=("parallel",),
            vmem_limit_bytes=_VMEM_LIMIT_BYTES),
    )(edge_slab, *edge_wts)

    out_r = slab_out[:E, :out_sca]
    out_i = slab_out[:E, out_sca:].reshape(E, 3, out_vec).transpose(1, 0, 2)
    return out_r, out_i


# ----------------------------------------------------------------------------
# Pure-JAX reference (same reconstruction) for a correctness sanity check
# ----------------------------------------------------------------------------
def _gv_linear_ref(x_s, x_v, Wr, Wi, W2, Wg, bg, Ws):
    vh = jnp.einsum('knc,hc->knh', x_v, Wr) + jnp.einsum('knc,hc->knh', x_v, Wi)
    norm = jnp.sqrt(jnp.sum(vh * vh, axis=0))
    cat = jnp.concatenate([norm, x_s], axis=-1)
    out_s = cat @ Ws.T
    out_v = jnp.einsum('knh,vh->knv', vh, W2)
    scale = out_s.shape[-1] ** -0.5
    gate = jax.nn.softmax((out_s @ Wg.T + bg) * scale, axis=-1)
    return out_s, gate[None] * out_v


def _vn_leaky_relu_ref(x_v, Wd, slope=_SLOPE):
    d = jnp.einsum('knc,oc->kno', x_v, Wd)
    dot = jnp.sum(x_v * d, axis=0, keepdims=True)
    mask = (dot >= 0).astype(x_v.dtype)
    dsq = jnp.sum(d * d, axis=0, keepdims=True)
    return slope * x_v + (1 - slope) * (mask * x_v + (1 - mask) * (x_v - dot / (dsq + EPS) * d))


def reference_forward(p, node_s, node_v, edge_s, edge_v, edge_index):
    ns, nv = _gv_linear_ref(node_s, node_v, p['nWr'], p['nWi'], p['nW2'],
                            p['nWg'], p['nbg'], p['nWs'])
    nr, ni = ns[edge_index], nv[:, edge_index, :]
    gs, gv = _gv_linear_ref(edge_s, edge_v, p['eWr'], p['eWi'], p['eW2'],
                            p['eWg'], p['ebg'], p['eWs'])
    er = _leaky_relu(gs)
    ei = _vn_leaky_relu_ref(gv, p['eWd'])
    y_real = nr * (er @ p['Wsl'].T + p['bsl'])
    e2n = er @ p['We2n'].T + p['be2n']
    n2e = nr @ p['Wn2e'].T + p['bn2e']
    evl = jnp.einsum('knc,oc->kno', ei, p['Wev']) + p['bev'][None]
    y_imag = e2n[None] * ni + n2e[None] * evl
    return _gv_linear_ref(y_real, y_imag, p['oWr'], p['oWi'], p['oW2'],
                          p['oWg'], p['obg'], p['oWs'])


# ----------------------------------------------------------------------------
if __name__ == "__main__":
    node_sca, node_vec = 16, 8
    edge_sca, edge_vec = 16, 8
    out_sca, out_vec = 16, 8
    n_nodes, n_edges = 16, 32

    key = jax.random.PRNGKey(0)
    kp, k1, k2, k3, k4, k5, k6 = jax.random.split(key, 7)
    params = init_params(kp, node_sca, node_vec, edge_sca, edge_vec, out_sca, out_vec)

    node_s = jax.random.normal(k1, (n_nodes, node_sca), jnp.float32)
    node_v = jax.random.normal(k2, (3, n_nodes, node_vec), jnp.float32)
    edge_s = jax.random.normal(k3, (n_edges, edge_sca), jnp.float32)
    edge_v = jax.random.normal(k4, (3, n_edges, edge_vec), jnp.float32)
    edge_index = jax.random.randint(k5, (n_edges,), 0, n_nodes, dtype=jnp.int32)

    # ---- check 1: plain forward ----
    out_r, out_i = complex_message_forward(params, node_s, node_v, edge_s, edge_v, edge_index)
    jax.block_until_ready((out_r, out_i))
    assert out_r.shape == (n_edges, out_sca)
    assert out_i.shape == (3, n_edges, out_vec)

    ref_r, ref_i = reference_forward(params, node_s, node_v, edge_s, edge_v, edge_index)
    np.testing.assert_allclose(np.asarray(out_r), np.asarray(ref_r), rtol=5e-2, atol=5e-2)
    np.testing.assert_allclose(np.asarray(out_i), np.asarray(ref_i), rtol=5e-2, atol=5e-2)
    assert np.all(np.isfinite(np.asarray(out_r))) and np.all(np.isfinite(np.asarray(out_i)))

    # ---- check 2: non-multiple-of-tile edge count (padding path), multi-step
    #      grid, and fused annealing cutoff ----
    n_edges2, n_nodes2 = 100, 24
    k7, k8, k9, k10, k11 = jax.random.split(k6, 5)
    node_s2 = jax.random.normal(k7, (n_nodes2, node_sca), jnp.float32)
    node_v2 = jax.random.normal(k8, (3, n_nodes2, node_vec), jnp.float32)
    edge_s2 = jax.random.normal(k9, (n_edges2, edge_sca), jnp.float32)
    edge_v2 = jax.random.normal(k10, (3, n_edges2, edge_vec), jnp.float32)
    ki, kd = jax.random.split(k11)
    edge_index2 = jax.random.randint(ki, (n_edges2,), 0, n_nodes2, dtype=jnp.int32)
    dist2 = jax.random.uniform(kd, (n_edges2,), jnp.float32, 0.0, 12.0)

    out_r2, out_i2 = complex_message_forward(params, node_s2, node_v2, edge_s2, edge_v2,
                                             edge_index2, dist_ij=dist2, annealing=True,
                                             cutoff=10.0, tile_edges=32)
    jax.block_until_ready((out_r2, out_i2))

    ref_r2, ref_i2 = reference_forward(params, node_s2, node_v2, edge_s2, edge_v2, edge_index2)
    C = 0.5 * (jnp.cos(dist2 * jnp.pi / 10.0) + 1.0)
    C = C * (dist2 <= 10.0).astype(jnp.float32) * (dist2 >= 0.0).astype(jnp.float32)
    ref_r2 = ref_r2 * C[:, None]
    ref_i2 = ref_i2 * C[None, :, None]
    np.testing.assert_allclose(np.asarray(out_r2), np.asarray(ref_r2), rtol=5e-2, atol=5e-2)
    np.testing.assert_allclose(np.asarray(out_i2), np.asarray(ref_i2), rtol=5e-2, atol=5e-2)
    assert np.all(np.isfinite(np.asarray(out_r2))) and np.all(np.isfinite(np.asarray(out_i2)))

    print("KERNEL_OK")
</pallas_src>

<mosaic_0001>
module attributes {stable_mosaic.version = 11 : i64} {
  func.func @_node_kernel(%arg0: i32, %arg1: memref<16x40xf32, #tpu.memory_space<vmem>>, %arg2: memref<24x24xf32, #tpu.memory_space<vmem>>, %arg3: memref<24x24xf32, #tpu.memory_space<vmem>>, %arg4: memref<16x8xf32, #tpu.memory_space<vmem>>, %arg5: memref<1x8xf32, #tpu.memory_space<vmem>>, %arg6: memref<8x16xf32, #tpu.memory_space<vmem>>, %arg7: memref<16x16xf32, #tpu.memory_space<vmem>>, %arg8: memref<16x40xf32, #tpu.memory_space<vmem>>) attributes {dimension_semantics = [#tpu.dimension_semantics<parallel>], iteration_bounds = array<i64: 1>, scalar_prefetch = 0 : i64, scratch_operands = 0 : i64, tpu.core_type = #tpu.core_type<tc>, window_params = [{transform_indices = @transform_0, window_bounds = array<i64: 16, 40>}, {pipeline_mode = #tpu.pipeline_mode<synchronous>, transform_indices = @transform_1, window_bounds = array<i64: 24, 24>}, {pipeline_mode = #tpu.pipeline_mode<synchronous>, transform_indices = @transform_2, window_bounds = array<i64: 24, 24>}, {pipeline_mode = #tpu.pipeline_mode<synchronous>, transform_indices = @transform_3, window_bounds = array<i64: 16, 8>}, {pipeline_mode = #tpu.pipeline_mode<synchronous>, transform_indices = @transform_4, window_bounds = array<i64: 1, 8>}, {pipeline_mode = #tpu.pipeline_mode<synchronous>, transform_indices = @transform_5, window_bounds = array<i64: 8, 16>}, {pipeline_mode = #tpu.pipeline_mode<synchronous>, transform_indices = @transform_6, window_bounds = array<i64: 16, 16>}, {transform_indices = @transform_7, window_bounds = array<i64: 16, 40>}]} {
    %c0 = arith.constant 0 : index
    %c0_0 = arith.constant 0 : index
    %0 = vector.load %arg1[%c0, %c0_0] : memref<16x40xf32, #tpu.memory_space<vmem>>, vector<16x40xf32>
    %1 = vector.extract_strided_slice %0 {offsets = [0, 0], sizes = [16, 16], strides = [1, 1]} : vector<16x40xf32> to vector<16x16xf32>
    %2 = vector.extract_strided_slice %0 {offsets = [0, 16], sizes = [16, 24], strides = [1, 1]} : vector<16x40xf32> to vector<16x24xf32>
    %c0_1 = arith.constant 0 : index
    %c0_2 = arith.constant 0 : index
    %3 = vector.load %arg2[%c0_1, %c0_2] : memref<24x24xf32, #tpu.memory_space<vmem>>, vector<24x24xf32>
    %c0_3 = arith.constant 0 : index
    %c0_4 = arith.constant 0 : index
    %4 = vector.load %arg3[%c0_3, %c0_4] : memref<24x24xf32, #tpu.memory_space<vmem>>, vector<24x24xf32>
    %c0_5 = arith.constant 0 : index
    %c0_6 = arith.constant 0 : index
    %5 = vector.load %arg4[%c0_5, %c0_6] : memref<16x8xf32, #tpu.memory_space<vmem>>, vector<16x8xf32>
    %c0_7 = arith.constant 0 : index
    %c0_8 = arith.constant 0 : index
    %6 = vector.load %arg5[%c0_7, %c0_8] : memref<1x8xf32, #tpu.memory_space<vmem>>, vector<1x8xf32>
    %c0_9 = arith.constant 0 : index
    %c0_10 = arith.constant 0 : index
    %7 = vector.load %arg6[%c0_9, %c0_10] : memref<8x16xf32, #tpu.memory_space<vmem>>, vector<8x16xf32>
    %c0_11 = arith.constant 0 : index
    %c0_12 = arith.constant 0 : index
    %8 = vector.load %arg7[%c0_11, %c0_12] : memref<16x16xf32, #tpu.memory_space<vmem>>, vector<16x16xf32>
    %cst = arith.constant dense<0.000000e+00> : vector<16x24xf32>
    %9 = tpu.matmul %2, %3, %cst {dimension_numbers = #tpu.dot_dimension_numbers<[1], [0], [0], [1], [0, 0, 1, 1], [], []>} : vector<16x24xf32>, vector<24x24xf32>, vector<16x24xf32> -> vector<16x24xf32>
    %10 = vector.extract_strided_slice %9 {offsets = [0, 0], sizes = [16, 8], strides = [1, 1]} : vector<16x24xf32> to vector<16x8xf32>
    %11 = vector.extract_strided_slice %9 {offsets = [0, 8], sizes = [16, 8], strides = [1, 1]} : vector<16x24xf32> to vector<16x8xf32>
    %12 = vector.extract_strided_slice %9 {offsets = [0, 16], sizes = [16, 8], strides = [1, 1]} : vector<16x24xf32> to vector<16x8xf32>
    %13 = arith.mulf %10, %10 : vector<16x8xf32>
    %14 = arith.mulf %11, %11 : vector<16x8xf32>
    %15 = arith.addf %13, %14 : vector<16x8xf32>
    %16 = arith.mulf %12, %12 : vector<16x8xf32>
    %17 = arith.addf %15, %16 : vector<16x8xf32>
    %18 = math.sqrt %17 : vector<16x8xf32>
    %cst_13 = arith.constant dense<0.000000e+00> : vector<16x16xf32>
    %19 = tpu.matmul %18, %7, %cst_13 {dimension_numbers = #tpu.dot_dimension_numbers<[1], [0], [0], [1], [0, 0, 1, 1], [], []>} : vector<16x8xf32>, vector<8x16xf32>, vector<16x16xf32> -> vector<16x16xf32>
    %cst_14 = arith.constant dense<0.000000e+00> : vector<16x16xf32>
    %20 = tpu.matmul %1, %8, %cst_14 {dimension_numbers = #tpu.dot_dimension_numbers<[1], [0], [0], [1], [0, 0, 1, 1], [], []>} : vector<16x16xf32>, vector<16x16xf32>, vector<16x16xf32> -> vector<16x16xf32>
    %21 = arith.addf %19, %20 : vector<16x16xf32>
    %cst_15 = arith.constant dense<0.000000e+00> : vector<16x24xf32>
    %22 = tpu.matmul %9, %4, %cst_15 {dimension_numbers = #tpu.dot_dimension_numbers<[1], [0], [0], [1], [0, 0, 1, 1], [], []>} : vector<16x24xf32>, vector<24x24xf32>, vector<16x24xf32> -> vector<16x24xf32>
    %cst_16 = arith.constant dense<0.000000e+00> : vector<16x8xf32>
    %23 = tpu.matmul %21, %5, %cst_16 {dimension_numbers = #tpu.dot_dimension_numbers<[1], [0], [0], [1], [0, 0, 1, 1], [], []>} : vector<16x16xf32>, vector<16x8xf32>, vector<16x8xf32> -> vector<16x8xf32>
    %24 = vector.broadcast %6 : vector<1x8xf32> to vector<16x8xf32>
    %25 = arith.addf %23, %24 : vector<16x8xf32>
    %cst_17 = arith.constant 2.500000e-01 : f32
    %26 = vector.broadcast %cst_17 : f32 to vector<16x8xf32>
    %27 = arith.mulf %25, %26 : vector<16x8xf32>
    %cst_18 = arith.constant dense<0xFF800000> : vector<16xf32>
    %28 = vector.multi_reduction <maximumf>, %27, %cst_18 [1] : vector<16x8xf32> to vector<16xf32>
    %29 = vector.shape_cast %28 : vector<16xf32> to vector<16x1xf32>
    %30 = vector.broadcast %29 : vector<16x1xf32> to vector<16x8xf32>
    %31 = arith.subf %27, %30 : vector<16x8xf32>
    %32 = math.exp %31 : vector<16x8xf32>
    %cst_19 = arith.constant dense<0.000000e+00> : vector<16xf32>
    %33 = vector.multi_reduction <add>, %32, %cst_19 [1] : vector<16x8xf32> to vector<16xf32>
    %34 = vector.shape_cast %33 : vector<16xf32> to vector<16x1xf32>
    %35 = tpu.reciprocal %34 {approx = true} : vector<16x1xf32> -> vector<16x1xf32>
    %36 = vector.broadcast %35 : vector<16x1xf32> to vector<16x8xf32>
    %37 = arith.mulf %32, %36 : vector<16x8xf32>
    %38 = tpu.concatenate %37, %37, %37 in 1 : vector<16x8xf32>, vector<16x8xf32>, vector<16x8xf32> -> vector<16x24xf32>
    %39 = arith.mulf %38, %22 : vector<16x24xf32>
    %40 = tpu.concatenate %21, %39 in 1 : vector<16x16xf32>, vector<16x24xf32> -> vector<16x40xf32>
    %c0_20 = arith.constant 0 : index
    %c0_21 = arith.constant 0 : index
    %41 = vector.load %arg8[%c0_20, %c0_21] : memref<16x40xf32, #tpu.memory_space<vmem>>, vector<16x40xf32>
    tpu.vector_store %arg8[%c0_20, %c0_21], %40 {strides = array<i32>} : memref<16x40xf32, #tpu.memory_space<vmem>>, vector<16x40xf32>,
    return
  }
  func.func @transform_0(%arg0: i32) -> (i32, i32) {
    %c0_i32 = arith.constant 0 : i32
    %c0_i32_0 = arith.constant 0 : i32
    return %arg0, %c0_i32 : i32, i32
  }
  func.func @transform_1(%arg0: i32) -> (i32, i32) {
    %c0_i32 = arith.constant 0 : i32
    %c0_i32_0 = arith.constant 0 : i32
    %c0_i32_1 = arith.constant 0 : i32
    return %c0_i32, %c0_i32_0 : i32, i32
  }
  func.func @transform_2(%arg0: i32) -> (i32, i32) {
    %c0_i32 = arith.constant 0 : i32
    %c0_i32_0 = arith.constant 0 : i32
    %c0_i32_1 = arith.constant 0 : i32
    return %c0_i32, %c0_i32_0 : i32, i32
  }
  func.func @transform_3(%arg0: i32) -> (i32, i32) {
    %c0_i32 = arith.constant 0 : i32
    %c0_i32_0 = arith.constant 0 : i32
    %c0_i32_1 = arith.constant 0 : i32
    return %c0_i32, %c0_i32_0 : i32, i32
  }
  func.func @transform_4(%arg0: i32) -> (i32, i32) {
    %c0_i32 = arith.constant 0 : i32
    %c0_i32_0 = arith.constant 0 : i32
    %c0_i32_1 = arith.constant 0 : i32
    return %c0_i32, %c0_i32_0 : i32, i32
  }
  func.func @transform_5(%arg0: i32) -> (i32, i32) {
    %c0_i32 = arith.constant 0 : i32
    %c0_i32_0 = arith.constant 0 : i32
    %c0_i32_1 = arith.constant 0 : i32
    return %c0_i32, %c0_i32_0 : i32, i32
  }
  func.func @transform_6(%arg0: i32) -> (i32, i32) {
    %c0_i32 = arith.constant 0 : i32
    %c0_i32_0 = arith.constant 0 : i32
    %c0_i32_1 = arith.constant 0 : i32
    return %c0_i32, %c0_i32_0 : i32, i32
  }
  func.func @transform_7(%arg0: i32) -> (i32, i32) {
    %c0_i32 = arith.constant 0 : i32
    %c0_i32_0 = arith.constant 0 : i32
    return %arg0, %c0_i32 : i32, i32
  }
}

</mosaic_0001>

<llo_original>
// kernel: tpu_custom_call.1
$region0: #{tpu_custom_call.1}
  #allocation0 [shape = 'u32[]', space=smem, size = 0x4, offset = 0x4, fixed_abs, tag = 'smem constant byte address 0x4 - core index']
  #allocation1 [shape = 'u32[144,128]{1,0:T(1,128)}', space=vmem, size = 0x12000, scoped, tag = 'internal scratch']
  %s0 = inlined_call_operand.hbm [shape: f32[16,40], index: 0, kind: input, shape index: {}]
  %s1 = inlined_call_operand.vmem [shape: f32[24,24], index: 1, kind: input, shape index: {}]
  %s2 = inlined_call_operand.hbm [shape: f32[24,24], index: 2, kind: input, shape index: {}]
  %s3 = inlined_call_operand.vmem [shape: f32[16,8], index: 3, kind: input, shape index: {}]
  %s4 = inlined_call_operand.vmem [shape: f32[1,8], index: 4, kind: input, shape index: {}]
  %s5 = inlined_call_operand.vmem [shape: f32[8,16], index: 5, kind: input, shape index: {}]
  %s6 = inlined_call_operand.hbm [shape: f32[16,16], index: 6, kind: input, shape index: {}]
  %s7 = inlined_call_operand.hbm [shape: f32[16,40], index: 7, kind: output, shape index: {}]
  %s8 = sld [smem:[#allocation0]]
  $region50: #{tpu_custom_call.1} parent=0
    _
  %s10 = ssub.s32 1, %s8
  %s11 = scalar_select 0, %s10, %s8
  $region1: #{tpu_custom_call.1} parent=0
    #allocation2 [shape = 'u8[8192]{0}', space=vmem, size = 0x2000, scoped, tag = 'input window, operand 0, single buffered']
    #allocation3 [shape = 's32[1]{0}', space=sflag, size = 0x4, scoped, tag = 'scoped memory for tpu_custom_call.1']
    #allocation4 [shape = 's32[1]{0}', space=sflag, size = 0x4, scoped, tag = 'scoped memory for tpu_custom_call.1']
    #allocation5 [shape = 'u8[12288]{0}', space=vmem, size = 0x3000, scoped, tag = 'input window, operand 2, single buffered']
    #allocation6 [shape = 's32[1]{0}', space=sflag, size = 0x4, scoped, tag = 'scoped memory for tpu_custom_call.1']
    #allocation7 [shape = 'u8[8192]{0}', space=vmem, size = 0x2000, scoped, tag = 'input window, operand 6, single buffered']
    #allocation8 [shape = 'u8[8192]{0}', space=vmem, size = 0x2000, scoped, tag = 'output window, operand 0, single buffered']
    %12 = vsyncpa [#allocation3], 0
    %13 = vsyncpa [#allocation6], 0
    %14 = vsyncpa [#allocation4], 0
    // Predicated region
    $region2: #{tpu_custom_call.1} parent=1 // pred_check
      _
    $region3: #{tpu_custom_call.1} parent=1 // pred_check_branch
      %16 = sbr.rel (0) target = $region5
    $region4: #{tpu_custom_call.1} parent=1 // pred_region
      %s18 = ssub.s32 256, 256
      %19 = vsyncadd [#allocation3], %s18
      %s20 = sshll.u32 [#allocation2], 4
      %s21 = int_to_ptr.vmem [resolvable:$true] %s20
      %26 = dma.hbm_to_vmem [thread:$0]  %s0, 256, %s21, [#allocation3], 128, 128, 8
    $region5: #{tpu_custom_call.1} parent=1 // pred_fallthru
      _
    // Predicated region
    $region6: #{tpu_custom_call.1} parent=1 // pred_check
      _
    $region7: #{tpu_custom_call.1} parent=1 // pred_check_branch
      %28 = sbr.rel (0) target = $region9
    $region8: #{tpu_custom_call.1} parent=1 // pred_region
      _
    $region9: #{tpu_custom_call.1} parent=1 // pred_fallthru
      _
    // Predicated region
    $region10: #{tpu_custom_call.1} parent=1 // pred_check
      _
    $region11: #{tpu_custom_call.1} parent=1 // pred_check_branch
      %30 = sbr.rel (0) target = $region13
    $region12: #{tpu_custom_call.1} parent=1 // pred_region
      %s32 = ssub.s32 384, 384
      %33 = vsyncadd [#allocation6], %s32
      %s34 = sshll.u32 [#allocation5], 4
      %s35 = int_to_ptr.vmem [resolvable:$true] %s34
      %40 = dma.hbm_to_vmem [thread:$0]  %s2, 384, %s35, [#allocation6], 128, 128, 8
    $region13: #{tpu_custom_call.1} parent=1 // pred_fallthru
      _
    // Predicated region
    $region14: #{tpu_custom_call.1} parent=1 // pred_check
      _
    $region15: #{tpu_custom_call.1} parent=1 // pred_check_branch
      %42 = sbr.rel (0) target = $region17
    $region16: #{tpu_custom_call.1} parent=1 // pred_region
      _
    $region17: #{tpu_custom_call.1} parent=1 // pred_fallthru
      _
    // Predicated region
    $region18: #{tpu_custom_call.1} parent=1 // pred_check
      _
    $region19: #{tpu_custom_call.1} parent=1 // pred_check_branch
      %44 = sbr.rel (0) target = $region21
    $region20: #{tpu_custom_call.1} parent=1 // pred_region
      _
    $region21: #{tpu_custom_call.1} parent=1 // pred_fallthru
      _
    // Predicated region
    $region22: #{tpu_custom_call.1} parent=1 // pred_check
      _
    $region23: #{tpu_custom_call.1} parent=1 // pred_check_branch
      %46 = sbr.rel (0) target = $region25
    $region24: #{tpu_custom_call.1} parent=1 // pred_region
      _
    $region25: #{tpu_custom_call.1} parent=1 // pred_fallthru
      _
    // Predicated region
    $region26: #{tpu_custom_call.1} parent=1 // pred_check
      _
    $region27: #{tpu_custom_call.1} parent=1 // pred_check_branch
      %48 = sbr.rel (0) target = $region29
    $region28: #{tpu_custom_call.1} parent=1 // pred_region
      %s50 = ssub.s32 256, 256
      %51 = vsyncadd [#allocation6], %s50
      %s52 = sshll.u32 [#allocation7], 4
      %s53 = int_to_ptr.vmem [resolvable:$true] %s52
      %58 = dma.hbm_to_vmem [thread:$0]  %s6, 256, %s53, [#allocation6], 128, 128, 8
    $region29: #{tpu_custom_call.1} parent=1 // pred_fallthru
      _
    // Predicated region
    $region30: #{tpu_custom_call.1} parent=1 // pred_check
      _
    $region31: #{tpu_custom_call.1} parent=1 // pred_check_branch
      %60 = sbr.rel (0) target = $region33
    $region32: #{tpu_custom_call.1} parent=1 // pred_region
      %61 = dma.done [#allocation3], 256
    $region33: #{tpu_custom_call.1} parent=1 // pred_fallthru
      _
    // Predicated region
    $region34: #{tpu_custom_call.1} parent=1 // pred_check
      _
    $region35: #{tpu_custom_call.1} parent=1 // pred_check_branch
      %63 = sbr.rel (0) target = $region37
    $region36: #{tpu_custom_call.1} parent=1 // pred_region
      %64 = dma.done [#allocation6], 384
    $region37: #{tpu_custom_call.1} parent=1 // pred_fallthru
      _
    // Predicated region
    $region38: #{tpu_custom_call.1} parent=1 // pred_check
      _
    $region39: #{tpu_custom_call.1} parent=1 // pred_check_branch
      %66 = sbr.rel (0) target = $region41
    $region40: #{tpu_custom_call.1} parent=1 // pred_region
      %67 = dma.done [#allocation6], 256
    $region41: #{tpu_custom_call.1} parent=1 // pred_fallthru
      _
    %v68 = vld [vmem:[#allocation2] sm:$0xff]
    %v69 = vld [vmem:[#allocation2 + $0x8] sm:$0xff]
    %v70 = vld [vmem:[%s1] sm:$0xff]
    %v71 = vld [vmem:[%s1 + $0x8] sm:$0xff]
    %v72 = vld [vmem:[%s1 + $0x10] sm:$0xff]
    %v73 = vld [vmem:[#allocation5] sm:$0xff]
    %v74 = vld [vmem:[#allocation5 + $0x8] sm:$0xff]
    %v75 = vld [vmem:[#allocation5 + $0x10] sm:$0xff]
    %v76 = vld [vmem:[%s3] sm:$0xff]
    %v77 = vld [vmem:[%s3 + $0x8] sm:$0xff]
    %v78 = vld [vmem:[%s4] sm:$0x1]
    %v79 = vld [vmem:[%s5] sm:$0xff]
    %v80 = vld [vmem:[#allocation7] sm:$0xff]
    %v81 = vld [vmem:[#allocation7 + $0x8] sm:$0xff]
    %84 = vrot.lane.b32.xlu0 %v68, 112
    %v85 = vpop.permute.xlu0 %84
    %86 = vrot.lane.b32.xlu0 %v69, 112
    %v87 = vpop.permute.xlu0 %86
    %vm88 = vcmask 195584
    %v89 = vsel %vm88, %v85, 0
    %v91 = vsel %vm88, %v87, 0
    %93 = vmatprep.subr.mxu0 0.0
    %94 = vmatpush1.msra.mxu0 0.0
    %95 = vmatprep.subr.mxu0 0.0
    %96 = vmatpush1.msra.mxu0 0.0
    %97 = vmatprep.subr.mxu0 0.0
    %98 = vmatpush1.msra.mxu0 0.0
    %99 = vmatprep.subr.mxu0 0.0
    %100 = vmatpush1.msra.mxu0 0.0
    %101 = vmatprep.subr.mxu0 0.0
    %102 = vmatpush1.msra.mxu0 0.0
    %103 = vmatprep.subr.mxu0 0.0
    %104 = vmatpush1.msra.mxu0 0.0
    %105 = vmatprep.subr.mxu0 0.0
    %106 = vmatpush1.msra.mxu0 0.0
    %107 = vmatprep.subr.mxu0 0.0
    %108 = vmatpush1.msra.mxu0 0.0
    %109 = vmatprep.subr.mxu0 0.0
    %110 = vmatpush1.msra.mxu0 0.0
    %111 = vmatprep.subr.mxu0 0.0
    %112 = vmatpush1.msra.mxu0 0.0
    %113 = vmatprep.subr.mxu0 0.0
    %114 = vmatpush1.msra.mxu0 0.0
    %115 = vmatprep.subr.mxu0 0.0
    %116 = vmatpush1.msra.mxu0 0.0
    %117 = vmatprep.subr.mxu0 0.0
    %118 = vmatpush1.msra.mxu0 0.0
    %119 = vmatprep.subr.mxu0 0.0
    %120 = vmatpush1.msra.mxu0 %v72
    %121 = vmatprep.subr.mxu0 0.0
    %122 = vmatpush1.msra.mxu0 %v71
    %123 = vmatprep.subr.mxu0 0.0
    %124 = vmatpush1.msra.mxu0 %v70
    %125 = vmatprep.subr.mxu0 0.0
    %126 = vmatpush2.msra.mxu0 0.0
    %127 = vmatprep.subr.mxu0 0.0
    %128 = vmatpush2.msra.mxu0 0.0
    %129 = vmatprep.subr.mxu0 0.0
    %130 = vmatpush2.msra.mxu0 0.0
    %131 = vmatprep.subr.mxu0 0.0
    %132 = vmatpush2.msra.mxu0 0.0
    %133 = vmatprep.subr.mxu0 0.0
    %134 = vmatpush2.msra.mxu0 0.0
    %135 = vmatprep.subr.mxu0 0.0
    %136 = vmatpush2.msra.mxu0 0.0
    %137 = vmatprep.subr.mxu0 0.0
    %138 = vmatpush2.msra.mxu0 0.0
    %139 = vmatprep.subr.mxu0 0.0
    %140 = vmatpush2.msra.mxu0 0.0
    %141 = vmatprep.subr.mxu0 0.0
    %142 = vmatpush2.msra.mxu0 0.0
    %143 = vmatprep.subr.mxu0 0.0
    %144 = vmatpush2.msra.mxu0 0.0
    %145 = vmatprep.subr.mxu0 0.0
    %146 = vmatpush2.msra.mxu0 0.0
    %147 = vmatprep.subr.mxu0 0.0
    %148 = vmatpush2.msra.mxu0 0.0
    %149 = vmatprep.subr.mxu0 0.0
    %150 = vmatpush2.msra.mxu0 0.0
    %151 = vmatprep.subr.mxu0 0.0
    %152 = vmatpush2.msra.mxu0 0.0
    %153 = vmatprep.subr.mxu0 0.0
    %154 = vmatpush2.msra.mxu0 0.0
    %155 = vmatprep.subr.mxu0 0.0
    %156 = vmatpush2.msra.mxu0 0.0
    %157 = vmatprep.mubr.f32.mxu0 0.0
    %158 = vmatmul.mubr.f32.gmra.mxu0 %v89
    %v159 = vpop.f32.mrf.mxu0
    %v160 = vadd.f32 0.0, %v159
    %v161 = vpop.f32.mrf.mxu0
    %162 = vmatprep.mubr.f32.mxu0 0.0
    %163 = vmatmul.mubr.f32.gmra.mxu0 %v91
    %v164 = vpop.f32.mrf.mxu0
    %v165 = vadd.f32 0.0, %v164
    %v166 = vpop.f32.mrf.mxu0
    %167 = vdwg.mxu0
    %v168 = vmul.f32 %v160, %v160
    %v169 = vmul.f32 %v165, %v165
    %172 = vrot.lane.b32.xlu0 %v168, 120
    %v173 = vpop.permute.xlu0 %172
    %174 = vrot.lane.b32.xlu0 %v169, 120
    %v175 = vpop.permute.xlu0 %174
    %v178 = vadd.f32 %v168, %v173
    %v179 = vadd.f32 %v169, %v175
    %180 = vrot.lane.b32.xlu0 %v168, 112
    %v181 = vpop.permute.xlu0 %180
    %182 = vrot.lane.b32.xlu0 %v169, 112
    %v183 = vpop.permute.xlu0 %182
    %v186 = vadd.f32 %v178, %v181
    %v187 = vadd.f32 %v179, %v183
    %v188 = vrsqrt.pop %v186
    %v189 = vmul.f32 %v186, %v188
    %vm190 = vcmp.eq.f32.partialorder %v186, inf
    %v191 = vsel %vm190, %v186, %v189
    %vm192 = vcmp.eq.f32.partialorder %v186, 0.0
    %v193 = vand.u32 %v186, 2147483648
    %v194 = vsel %vm192, %v193, %v191
    %v195 = vrsqrt.pop %v187
    %v196 = vmul.f32 %v187, %v195
    %vm197 = vcmp.eq.f32.partialorder %v187, inf
    %v198 = vsel %vm197, %v187, %v196
    %vm199 = vcmp.eq.f32.partialorder %v187, 0.0
    %v200 = vand.u32 %v187, 2147483648
    %v201 = vsel %vm199, %v200, %v198
    %vm202 = vcmask 130048
    %v203 = vsel %vm202, %v68, 0
    %v205 = vsel %vm202, %v69, 0
    %207 = vmatprep.subr.mxu0 0.0
    %208 = vmatpush1.msra.mxu0 0.0
    %209 = vmatprep.subr.mxu0 0.0
    %210 = vmatpush1.msra.mxu0 0.0
    %211 = vmatprep.subr.mxu0 0.0
    %212 = vmatpush1.msra.mxu0 0.0
    %213 = vmatprep.subr.mxu0 0.0
    %214 = vmatpush1.msra.mxu0 0.0
    %215 = vmatprep.subr.mxu0 0.0
    %216 = vmatpush1.msra.mxu0 0.0
    %217 = vmatprep.subr.mxu0 0.0
    %218 = vmatpush1.msra.mxu0 0.0
    %219 = vmatprep.subr.mxu0 0.0
    %220 = vmatpush1.msra.mxu0 0.0
    %221 = vmatprep.subr.mxu0 0.0
    %222 = vmatpush1.msra.mxu0 0.0
    %223 = vmatprep.subr.mxu0 0.0
    %224 = vmatpush1.msra.mxu0 0.0
    %225 = vmatprep.subr.mxu0 0.0
    %226 = vmatpush1.msra.mxu0 0.0
    %227 = vmatprep.subr.mxu0 0.0
    %228 = vmatpush1.msra.mxu0 0.0
    %229 = vmatprep.subr.mxu0 0.0
    %230 = vmatpush1.msra.mxu0 0.0
    %231 = vmatprep.subr.mxu0 0.0
    %232 = vmatpush1.msra.mxu0 0.0
    %233 = vmatprep.subr.mxu0 0.0
    %234 = vmatpush1.msra.mxu0 0.0
    %235 = vmatprep.subr.mxu0 0.0
    %236 = vmatpush1.msra.mxu0 %v81
    %237 = vmatprep.subr.mxu0 0.0
    %238 = vmatpush1.msra.mxu0 %v80
    %239 = vmatprep.subr.mxu0 0.0
    %240 = vmatpush2.msra.mxu0 0.0
    %241 = vmatprep.subr.mxu0 0.0
    %242 = vmatpush2.msra.mxu0 0.0
    %243 = vmatprep.subr.mxu0 0.0
    %244 = vmatpush2.msra.mxu0 0.0
    %245 = vmatprep.subr.mxu0 0.0
    %246 = vmatpush2.msra.mxu0 0.0
    %247 = vmatprep.subr.mxu0 0.0
    %248 = vmatpush2.msra.mxu0 0.0
    %249 = vmatprep.subr.mxu0 0.0
    %250 = vmatpush2.msra.mxu0 0.0
    %251 = vmatprep.subr.mxu0 0.0
    %252 = vmatpush2.msra.mxu0 0.0
    %253 = vmatprep.subr.mxu0 0.0
    %254 = vmatpush2.msra.mxu0 0.0
    %255 = vmatprep.subr.mxu0 0.0
    %256 = vmatpush2.msra.mxu0 0.0
    %257 = vmatprep.subr.mxu0 0.0
    %258 = vmatpush2.msra.mxu0 0.0
    %259 = vmatprep.subr.mxu0 0.0
    %260 = vmatpush2.msra.mxu0 0.0
    %261 = vmatprep.subr.mxu0 0.0
    %262 = vmatpush2.msra.mxu0 0.0
    %263 = vmatprep.subr.mxu0 0.0
    %264 = vmatpush2.msra.mxu0 0.0
    %265 = vmatprep.subr.mxu0 0.0
    %266 = vmatpush2.msra.mxu0 0.0
    %267 = vmatprep.subr.mxu0 0.0
    %268 = vmatpush2.msra.mxu0 0.0
    %269 = vmatprep.subr.mxu0 0.0
    %270 = vmatpush2.msra.mxu0 0.0
    %271 = vmatprep.mubr.f32.mxu0 0.0
    %272 = vmatmul.mubr.f32.gmra.mxu0 %v203
    %v273 = vpop.f32.mrf.mxu0
    %v274 = vadd.f32 0.0, %v273
    %v275 = vpop.f32.mrf.mxu0
    %276 = vmatprep.mubr.f32.mxu0 0.0
    %277 = vmatmul.mubr.f32.gmra.mxu0 %v205
    %v278 = vpop.f32.mrf.mxu0
    %v279 = vadd.f32 0.0, %v278
    %v280 = vpop.f32.mrf.mxu0
    %281 = vdwg.mxu0
    %vm282 = vcmask 64512
    %v284 = vsel %vm282, %v194, 0
    %v287 = vsel %vm282, %v201, 0
    %289 = vmatprep.subr.mxu0 0.0
    %290 = vmatpush1.msra.mxu0 0.0
    %291 = vmatprep.subr.mxu0 0.0
    %292 = vmatpush1.msra.mxu0 0.0
    %293 = vmatprep.subr.mxu0 0.0
    %294 = vmatpush1.msra.mxu0 0.0
    %295 = vmatprep.subr.mxu0 0.0
    %296 = vmatpush1.msra.mxu0 0.0
    %297 = vmatprep.subr.mxu0 0.0
    %298 = vmatpush1.msra.mxu0 0.0
    %299 = vmatprep.subr.mxu0 0.0
    %300 = vmatpush1.msra.mxu0 0.0
    %301 = vmatprep.subr.mxu0 0.0
    %302 = vmatpush1.msra.mxu0 0.0
    %303 = vmatprep.subr.mxu0 0.0
    %304 = vmatpush1.msra.mxu0 0.0
    %305 = vmatprep.subr.mxu0 0.0
    %306 = vmatpush1.msra.mxu0 0.0
    %307 = vmatprep.subr.mxu0 0.0
    %308 = vmatpush1.msra.mxu0 0.0
    %309 = vmatprep.subr.mxu0 0.0
    %310 = vmatpush1.msra.mxu0 0.0
    %311 = vmatprep.subr.mxu0 0.0
    %312 = vmatpush1.msra.mxu0 0.0
    %313 = vmatprep.subr.mxu0 0.0
    %314 = vmatpush1.msra.mxu0 0.0
    %315 = vmatprep.subr.mxu0 0.0
    %316 = vmatpush1.msra.mxu0 0.0
    %317 = vmatprep.subr.mxu0 0.0
    %318 = vmatpush1.msra.mxu0 0.0
    %319 = vmatprep.subr.mxu0 0.0
    %320 = vmatpush1.msra.mxu0 %v79
    %321 = vmatprep.subr.mxu0 0.0
    %322 = vmatpush2.msra.mxu0 0.0
    %323 = vmatprep.subr.mxu0 0.0
    %324 = vmatpush2.msra.mxu0 0.0
    %325 = vmatprep.subr.mxu0 0.0
    %326 = vmatpush2.msra.mxu0 0.0
    %327 = vmatprep.subr.mxu0 0.0
    %328 = vmatpush2.msra.mxu0 0.0
    %329 = vmatprep.subr.mxu0 0.0
    %330 = vmatpush2.msra.mxu0 0.0
    %331 = vmatprep.subr.mxu0 0.0
    %332 = vmatpush2.msra.mxu0 0.0
    %333 = vmatprep.subr.mxu0 0.0
    %334 = vmatpush2.msra.mxu0 0.0
    %335 = vmatprep.subr.mxu0 0.0
    %336 = vmatpush2.msra.mxu0 0.0
    %337 = vmatprep.subr.mxu0 0.0
    %338 = vmatpush2.msra.mxu0 0.0
    %339 = vmatprep.subr.mxu0 0.0
    %340 = vmatpush2.msra.mxu0 0.0
    %341 = vmatprep.subr.mxu0 0.0
    %342 = vmatpush2.msra.mxu0 0.0
    %343 = vmatprep.subr.mxu0 0.0
    %344 = vmatpush2.msra.mxu0 0.0
    %345 = vmatprep.subr.mxu0 0.0
    %346 = vmatpush2.msra.mxu0 0.0
    %347 = vmatprep.subr.mxu0 0.0
    %348 = vmatpush2.msra.mxu0 0.0
    %349 = vmatprep.subr.mxu0 0.0
    %350 = vmatpush2.msra.mxu0 0.0
    %351 = vmatprep.subr.mxu0 0.0
    %352 = vmatpush2.msra.mxu0 0.0
    %353 = vmatprep.mubr.f32.mxu0 0.0
    %354 = vmatmul.mubr.f32.gmra.mxu0 %v284
    %v355 = vpop.f32.mrf.mxu0
    %v356 = vadd.f32 %v274, %v355
    %v357 = vpop.f32.mrf.mxu0
    %358 = vmatprep.mubr.f32.mxu0 0.0
    %359 = vmatmul.mubr.f32.gmra.mxu0 %v287
    %v360 = vpop.f32.mrf.mxu0
    %v361 = vadd.f32 %v279, %v360
    %v362 = vpop.f32.mrf.mxu0
    %363 = vdwg.mxu0
    %v365 = vsel %vm88, %v160, 0
    %v368 = vsel %vm88, %v165, 0
    %370 = vmatprep.subr.mxu0 0.0
    %371 = vmatpush1.msra.mxu0 0.0
    %372 = vmatprep.subr.mxu0 0.0
    %373 = vmatpush1.msra.mxu0 0.0
    %374 = vmatprep.subr.mxu0 0.0
    %375 = vmatpush1.msra.mxu0 0.0
    %376 = vmatprep.subr.mxu0 0.0
    %377 = vmatpush1.msra.mxu0 0.0
    %378 = vmatprep.subr.mxu0 0.0
    %379 = vmatpush1.msra.mxu0 0.0
    %380 = vmatprep.subr.mxu0 0.0
    %381 = vmatpush1.msra.mxu0 0.0
    %382 = vmatprep.subr.mxu0 0.0
    %383 = vmatpush1.msra.mxu0 0.0
    %384 = vmatprep.subr.mxu0 0.0
    %385 = vmatpush1.msra.mxu0 0.0
    %386 = vmatprep.subr.mxu0 0.0
    %387 = vmatpush1.msra.mxu0 0.0
    %388 = vmatprep.subr.mxu0 0.0
    %389 = vmatpush1.msra.mxu0 0.0
    %390 = vmatprep.subr.mxu0 0.0
    %391 = vmatpush1.msra.mxu0 0.0
    %392 = vmatprep.subr.mxu0 0.0
    %393 = vmatpush1.msra.mxu0 0.0
    %394 = vmatprep.subr.mxu0 0.0
    %395 = vmatpush1.msra.mxu0 0.0
    %396 = vmatprep.subr.mxu0 0.0
    %397 = vmatpush1.msra.mxu0 %v75
    %398 = vmatprep.subr.mxu0 0.0
    %399 = vmatpush1.msra.mxu0 %v74
    %400 = vmatprep.subr.mxu0 0.0
    %401 = vmatpush1.msra.mxu0 %v73
    %402 = vmatprep.subr.mxu0 0.0
    %403 = vmatpush2.msra.mxu0 0.0
    %404 = vmatprep.subr.mxu0 0.0
    %405 = vmatpush2.msra.mxu0 0.0
    %406 = vmatprep.subr.mxu0 0.0
    %407 = vmatpush2.msra.mxu0 0.0
    %408 = vmatprep.subr.mxu0 0.0
    %409 = vmatpush2.msra.mxu0 0.0
    %410 = vmatprep.subr.mxu0 0.0
    %411 = vmatpush2.msra.mxu0 0.0
    %412 = vmatprep.subr.mxu0 0.0
    %413 = vmatpush2.msra.mxu0 0.0
    %414 = vmatprep.subr.mxu0 0.0
    %415 = vmatpush2.msra.mxu0 0.0
    %416 = vmatprep.subr.mxu0 0.0
    %417 = vmatpush2.msra.mxu0 0.0
    %418 = vmatprep.subr.mxu0 0.0
    %419 = vmatpush2.msra.mxu0 0.0
    %420 = vmatprep.subr.mxu0 0.0
    %421 = vmatpush2.msra.mxu0 0.0
    %422 = vmatprep.subr.mxu0 0.0
    %423 = vmatpush2.msra.mxu0 0.0
    %424 = vmatprep.subr.mxu0 0.0
    %425 = vmatpush2.msra.mxu0 0.0
    %426 = vmatprep.subr.mxu0 0.0
    %427 = vmatpush2.msra.mxu0 0.0
    %428 = vmatprep.subr.mxu0 0.0
    %429 = vmatpush2.msra.mxu0 0.0
    %430 = vmatprep.subr.mxu0 0.0
    %431 = vmatpush2.msra.mxu0 0.0
    %432 = vmatprep.subr.mxu0 0.0
    %433 = vmatpush2.msra.mxu0 0.0
    %434 = vmatprep.mubr.f32.mxu0 0.0
    %435 = vmatmul.mubr.f32.gmra.mxu0 %v365
    %v436 = vpop.f32.mrf.mxu0
    %v437 = vadd.f32 0.0, %v436
    %v438 = vpop.f32.mrf.mxu0
    %439 = vmatprep.mubr.f32.mxu0 0.0
    %440 = vmatmul.mubr.f32.gmra.mxu0 %v368
    %v441 = vpop.f32.mrf.mxu0
    %v442 = vadd.f32 0.0, %v441
    %v443 = vpop.f32.mrf.mxu0
    %444 = vdwg.mxu0
    %v446 = vlaneseq
    %v447 = vshrl.u32 %v446, 7
    %v448 = vsub.s32 0, %v447
    %v449 = vrot.slane %v78, %v448
    %v452 = vsel %vm202, %v356, 0
    %v455 = vsel %vm202, %v361, 0
    %457 = vmatprep.subr.mxu0 0.0
    %458 = vmatpush1.msra.mxu0 0.0
    %459 = vmatprep.subr.mxu0 0.0
    %460 = vmatpush1.msra.mxu0 0.0
    %461 = vmatprep.subr.mxu0 0.0
    %462 = vmatpush1.msra.mxu0 0.0
    %463 = vmatprep.subr.mxu0 0.0
    %464 = vmatpush1.msra.mxu0 0.0
    %465 = vmatprep.subr.mxu0 0.0
    %466 = vmatpush1.msra.mxu0 0.0
    %467 = vmatprep.subr.mxu0 0.0
    %468 = vmatpush1.msra.mxu0 0.0
    %469 = vmatprep.subr.mxu0 0.0
    %470 = vmatpush1.msra.mxu0 0.0
    %471 = vmatprep.subr.mxu0 0.0
    %472 = vmatpush1.msra.mxu0 0.0
    %473 = vmatprep.subr.mxu0 0.0
    %474 = vmatpush1.msra.mxu0 0.0
    %475 = vmatprep.subr.mxu0 0.0
    %476 = vmatpush1.msra.mxu0 0.0
    %477 = vmatprep.subr.mxu0 0.0
    %478 = vmatpush1.msra.mxu0 0.0
    %479 = vmatprep.subr.mxu0 0.0
    %480 = vmatpush1.msra.mxu0 0.0
    %481 = vmatprep.subr.mxu0 0.0
    %482 = vmatpush1.msra.mxu0 0.0
    %483 = vmatprep.subr.mxu0 0.0
    %484 = vmatpush1.msra.mxu0 0.0
    %485 = vmatprep.subr.mxu0 0.0
    %486 = vmatpush1.msra.mxu0 %v77
    %487 = vmatprep.subr.mxu0 0.0
    %488 = vmatpush1.msra.mxu0 %v76
    %489 = vmatprep.subr.mxu0 0.0
    %490 = vmatpush2.msra.mxu0 0.0
    %491 = vmatprep.subr.mxu0 0.0
    %492 = vmatpush2.msra.mxu0 0.0
    %493 = vmatprep.subr.mxu0 0.0
    %494 = vmatpush2.msra.mxu0 0.0
    %495 = vmatprep.subr.mxu0 0.0
    %496 = vmatpush2.msra.mxu0 0.0
    %497 = vmatprep.subr.mxu0 0.0
    %498 = vmatpush2.msra.mxu0 0.0
    %499 = vmatprep.subr.mxu0 0.0
    %500 = vmatpush2.msra.mxu0 0.0
    %501 = vmatprep.subr.mxu0 0.0
    %502 = vmatpush2.msra.mxu0 0.0
    %503 = vmatprep.subr.mxu0 0.0
    %504 = vmatpush2.msra.mxu0 0.0
    %505 = vmatprep.subr.mxu0 0.0
    %506 = vmatpush2.msra.mxu0 0.0
    %507 = vmatprep.subr.mxu0 0.0
    %508 = vmatpush2.msra.mxu0 0.0
    %509 = vmatprep.subr.mxu0 0.0
    %510 = vmatpush2.msra.mxu0 0.0
    %511 = vmatprep.subr.mxu0 0.0
    %512 = vmatpush2.msra.mxu0 0.0
    %513 = vmatprep.subr.mxu0 0.0
    %514 = vmatpush2.msra.mxu0 0.0
    %515 = vmatprep.subr.mxu0 0.0
    %516 = vmatpush2.msra.mxu0 0.0
    %517 = vmatprep.subr.mxu0 0.0
    %518 = vmatpush2.msra.mxu0 0.0
    %519 = vmatprep.subr.mxu0 0.0
    %520 = vmatpush2.msra.mxu0 0.0
    %521 = vmatprep.mubr.f32.mxu0 0.0
    %522 = vmatmul.mubr.f32.gmra.mxu0 %v452
    %v523 = vpop.f32.mrf.mxu0
    %v524 = vadd.f32 %v449, %v523
    %v525 = vpop.f32.mrf.mxu0
    %526 = vmatprep.mubr.f32.mxu0 0.0
    %527 = vmatmul.mubr.f32.gmra.mxu0 %v455
    %v528 = vpop.f32.mrf.mxu0
    %v529 = vadd.f32 %v449, %v528
    %v530 = vpop.f32.mrf.mxu0
    %531 = vdwg.mxu0
    %v532 = vmul.f32 %v524, 0.25
    %v533 = vmul.f32 %v529, 0.25
    %v534 = vsel %vm282, %v532, -inf
    %535 = vmax.xlane.f32.xlu0 %v534
    %v536 = vpop.xlane.xlu0 %535
    %v537 = vsel %vm282, %v533, -inf
    %538 = vmax.xlane.f32.xlu0 %v537
    %v539 = vpop.xlane.xlu0 %538
    %v540 = vsub.f32 %v532, %v536
    %v541 = vsub.f32 %v533, %v539
    %v542 = vmul.f32 %v540, 1.442695
    %v543 = vpow.pop %v542
    %v544 = vmul.f32 %v541, 1.442695
    %v545 = vpow.pop %v544
    %v546 = vsel %vm282, %v543, 0.0
    %547 = vadd.xlane.f32.xlu0 %v546
    %v548 = vpop.xlane.xlu0 %547
    %v549 = vsel %vm282, %v545, 0.0
    %550 = vadd.xlane.f32.xlu0 %v549
    %v551 = vpop.xlane.xlu0 %550
    %v552 = vrcp.pop %v548
    %v553 = vrcp.pop %v551
    %v554 = vmul.f32 %v543, %v552
    %v555 = vmul.f32 %v545, %v553
    %558 = vrot.lane.b32.xlu0 %v554, 8
    %v559 = vpop.permute.xlu0 %558
    %560 = vrot.lane.b32.xlu0 %v555, 8
    %v561 = vpop.permute.xlu0 %560
    %564 = vrot.lane.b32.xlu0 %v554, 16
    %v565 = vpop.permute.xlu0 %564
    %566 = vrot.lane.b32.xlu0 %v555, 16
    %v567 = vpop.permute.xlu0 %566
    %v570 = vsel %vm282, %v554, %v559
    %v571 = vsel %vm282, %v555, %v561
    %v572 = vsel %vm202, %v570, %v565
    %v573 = vsel %vm202, %v571, %v567
    %v574 = vmul.f32 %v572, %v437
    %v575 = vmul.f32 %v573, %v442
    %578 = vrot.lane.b32.xlu0 %v574, 16
    %v579 = vpop.permute.xlu0 %578
    %580 = vrot.lane.b32.xlu0 %v575, 16
    %v581 = vpop.permute.xlu0 %580
    %v584 = vsel %vm202, %v356, %v579
    %v585 = vsel %vm202, %v361, %v581
    %vm586 = vcmask 326656
    %587 = vst.msk [vmem:[#allocation8] sm:$0xff] %vm586, %v584
    %588 = vst.msk [vmem:[#allocation8 + $0x8] sm:$0xff] %vm586, %v585
    // Predicated region
    $region42: #{tpu_custom_call.1} parent=1 // pred_check
      _
    $region43: #{tpu_custom_call.1} parent=1 // pred_check_branch
      %590 = sbr.rel (0) target = $region45
    $region44: #{tpu_custom_call.1} parent=1 // pred_region
      %s592 = ssub.s32 256, 256
      %593 = vsyncadd [#allocation4], %s592
      %s594 = sshll.u32 [#allocation8], 4
      %s595 = int_to_ptr.vmem [resolvable:$true] %s594
      %600 = dma.vmem_to_hbm [thread:$0]  %s595, 256, %s7, [#allocation4], 128, 128, 8
    $region45: #{tpu_custom_call.1} parent=1 // pred_fallthru
      _
    // Predicated region
    $region46: #{tpu_custom_call.1} parent=1 // pred_check
      _
    $region47: #{tpu_custom_call.1} parent=1 // pred_check_branch
      %602 = sbr.rel (0) target = $region49
    $region48: #{tpu_custom_call.1} parent=1 // pred_region
      %603 = dma.done [#allocation4], 256
    $region49: #{tpu_custom_call.1} parent=1 // pred_fallthru
      _
    %604 = vsyncpa [#allocation3], 1
    %605 = vsyncpa [#allocation6], 1
    %606 = vsyncpa [#allocation4], 1

</llo_original>
